<compile_context>
chip_gen: v7x
topology: tpu7x:2x2x1
jax: 0.10.0
libtpu: 0.0.40
codegen_flags: <defaults>
</compile_context>

<pallas_src>
import functools

import jax
import jax.numpy as jnp
from jax import lax
from jax.experimental import pallas as pl
from jax.experimental.pallas import tpu as pltpu

# Deterministic "parameters" from FocalLoss.__init__ (DEFAULT_PARAMS)
ALPHA = 0.25
GAMMA = 2.0
EPS = 1e-6


def _focal_loss_kernel(out_ref, tgt_ref, msk_ref, valid_ref,
                       loss_part_ref, norm_part_ref,
                       *, total_rows, total_lanes, block_rows, block_lanes,
                       mask_row_tail, mask_lane_tail):
    """One (block_rows, block_lanes) tile -> two (8, 128) partial-sum slabs."""
    # Upcast in-kernel (inputs may be bf16 / int8 / bool); accumulate in f32.
    o = out_ref[...].astype(jnp.float32)
    t = tgt_ref[...].astype(jnp.float32)
    m = msk_ref[...].astype(jnp.float32)
    v = valid_ref[...].astype(jnp.float32)            # (block_rows, 1), {0,1}

    # pt = o*t + (1-o)*(1-t)  ==  1 - o - t + 2*o*t      (fewer VALU ops)
    pt = 1.0 - o - t + 2.0 * (o * t)
    pt = jnp.clip(pt, EPS, 1.0 - EPS)
    # at = alpha*t + (1-alpha)*(1-t)  ==  (1-alpha) + (2*alpha-1)*t
    at = (1.0 - ALPHA) + (2.0 * ALPHA - 1.0) * t
    omp = 1.0 - pt
    focal = omp * omp if float(GAMMA) == 2.0 else omp ** GAMMA
    loss = (-at) * focal * jnp.log(pt)                 # log runs on the EUP slot

    weighted_loss = loss * v                           # fold per-(n,c) validity
    tm = t * m                                         # normalization numerator

    # Ragged tails: out-of-bounds elements hold stale VMEM garbage (possibly
    # NaN), so remove them with selects (not multiplies).  Static flags => no
    # code at all when the blocks tile the array exactly.
    # TODO(synk): once inputs are narrow enough to be VALU-bound (v7x), gate
    # these selects to the last row/lane block only (lax.cond) per the review.
    if mask_row_tail or mask_lane_tail:
        in_bounds = None
        if mask_row_tail:
            row_ids = (pl.program_id(0) * block_rows +
                       lax.broadcasted_iota(jnp.int32, (block_rows, 1), 0))
            in_bounds = row_ids < total_rows
        if mask_lane_tail:
            lane_ids = (pl.program_id(1) * block_lanes +
                        lax.broadcasted_iota(jnp.int32, (1, block_lanes), 1))
            lane_ok = lane_ids < total_lanes
            in_bounds = lane_ok if in_bounds is None else in_bounds & lane_ok
        weighted_loss = jnp.where(in_bounds, weighted_loss, 0.0)
        tm = jnp.where(in_bounds, tm, 0.0)

    # Reduce the whole tile to one scalar per output and place it at [0, 0] of
    # an (8, 128) slab: output stores stay (8,128)-tile aligned and lane-dense,
    # while HBM writeback per grid step is only ~8 KB.  The other slab entries
    # are zeros and vanish in the final jnp.sum.
    rows8 = lax.broadcasted_iota(jnp.int32, (8, 128), 0)
    lanes = lax.broadcasted_iota(jnp.int32, (8, 128), 1)
    at00 = (rows8 == 0) & (lanes == 0)

    def fold(x):
        col = jnp.sum(x, axis=0, keepdims=True)        # (1, block_lanes)
        s = jnp.sum(col, axis=1, keepdims=True)        # (1, 1)
        return jnp.where(at00, s, 0.0)                 # (8, 128)

    # TODO(synk): the reduction could run on the idle MXU (matmul against a
    # ones selector) if the kernel ever becomes VALU-bound with narrow inputs.
    loss_part_ref[...] = fold(weighted_loss)
    norm_part_ref[...] = fold(tm)


def _vmem_limits():
    """Return (vmem_limit_bytes, double-buffered input budget) per generation."""
    cap = None
    try:
        info = pltpu.get_tpu_info()
        for attr in ("vmem_capacity_bytes", "vmem_bytes", "vmem_capacity"):
            val = getattr(info, attr, None)
            if val:
                cap = int(val)
                break
    except Exception:
        cap = None
    if cap is None:
        cap = 64 * 1024 * 1024                  # conservative: v7x-sized VMEM
    if cap >= 100 * 1024 * 1024:                # v5e / v6e class: 128 MiB physical
        return 100 * 1024 * 1024, 80 * 1024 * 1024
    # v7x class: 64 MiB physical -> 48 MiB limit, ~38 MiB of input double-buffers
    # (outputs are now only 2 x 2 x 8x128 f32 = 16 KiB, so inputs get the room).
    return 48 * 1024 * 1024, 38 * 1024 * 1024


def _choose_blocks(num_rows, num_lanes, stream_bytes, input_budget):
    """Pick (block_rows, block_lanes): multiples of (8, 128) or full extents."""
    LANE_CAP = 32 * 1024                        # lane-block cap: few-MiB DMA steps

    if num_lanes % 128 == 0 and num_lanes > LANE_CAP:
        block_lanes = LANE_CAP
    else:
        # Full lane extent: always legal, and required when num_lanes % 128 != 0.
        # TODO(synk): lane-tile non-multiple-of-128 extents with lane masking.
        block_lanes = num_lanes

    # Double-buffered bytes per row: 3 input streams (true itemsizes) plus the
    # lane-padded (block_rows, 1) -> (block_rows, 128) f32 validity column.
    per_row = 2 * block_lanes * stream_bytes + 2 * 128 * 4
    rows_cap = max(8, int(input_budget // per_row) // 8 * 8)
    rows_cap = min(rows_cap, 4096)              # well past the HBM-roofline knee

    block_rows = num_rows if num_rows <= rows_cap else rows_cap

    nrb = pl.cdiv(num_rows, block_rows)
    nlb = pl.cdiv(num_lanes, block_lanes)

    # Megacore: keep >= 2 grid cells when possible so the 'parallel' axes can be
    # sharded across both TensorCores on v7x.
    if nrb * nlb < 2:
        if num_rows >= 16:
            block_rows = ((num_rows + 1) // 2 + 7) // 8 * 8
            nrb = pl.cdiv(num_rows, block_rows)
        elif num_lanes % 256 == 0 and num_lanes >= 256:
            block_lanes = (num_lanes // 2) // 128 * 128
            nlb = pl.cdiv(num_lanes, block_lanes)

    return block_rows, block_lanes, nrb, nlb


def focal_loss(output, target, mask, valid_channel_idx):
    """output/target/mask: (N, C, H, W); valid_channel_idx: (N, C) bool.

    `output` may be f32 or bf16 and `target`/`mask` may be float / int8 / bool:
    the kernel upcasts in VMEM, and block sizing uses the true input itemsizes.
    """
    N, C, H, W = output.shape
    assert target.shape == output.shape and mask.shape == output.shape
    # TODO(synk): the F.interpolate resize branch (target/mask spatial dims
    # differing from output) is not implemented; shapes are assumed equal.

    R, L = N * C, H * W

    # Metadata-only reshapes: no copies/casts of the big tensors in the wrapper.
    out2d = output.reshape(R, L)
    tgt2d = target.reshape(R, L)
    msk2d = mask.reshape(R, L)
    valid2d = valid_channel_idx.reshape(R, 1).astype(jnp.float32)  # tiny column

    stream_bytes = (out2d.dtype.itemsize + tgt2d.dtype.itemsize +
                    msk2d.dtype.itemsize)
    vmem_limit, input_budget = _vmem_limits()
    block_rows, block_lanes, nrb, nlb = _choose_blocks(
        R, L, stream_bytes, input_budget)
    mask_row_tail = (R % block_rows) != 0
    mask_lane_tail = (L % block_lanes) != 0

    kernel = functools.partial(
        _focal_loss_kernel,
        total_rows=R, total_lanes=L,
        block_rows=block_rows, block_lanes=block_lanes,
        mask_row_tail=mask_row_tail, mask_lane_tail=mask_lane_tail)

    loss_parts, norm_parts = pl.pallas_call(
        kernel,
        out_shape=(jax.ShapeDtypeStruct((nrb * 8, nlb * 128), jnp.float32),
                   jax.ShapeDtypeStruct((nrb * 8, nlb * 128), jnp.float32)),
        grid=(nrb, nlb),
        in_specs=[
            pl.BlockSpec((block_rows, block_lanes), lambda i, j: (i, j)),
            pl.BlockSpec((block_rows, block_lanes), lambda i, j: (i, j)),
            pl.BlockSpec((block_rows, block_lanes), lambda i, j: (i, j)),
            pl.BlockSpec((block_rows, 1), lambda i, j: (i, 0)),
        ],
        out_specs=(pl.BlockSpec((8, 128), lambda i, j: (i, j)),
                   pl.BlockSpec((8, 128), lambda i, j: (i, j))),
        compiler_params=pltpu.CompilerParams(
            dimension_semantics=("parallel", "parallel"),  # no cross-step carry
            vmem_limit_bytes=vmem_limit),
    )(out2d, tgt2d, msk2d, valid2d)

    # Tiny final reduction + normalization in plain JAX (f32 pairwise sum of
    # per-block partials: better accuracy than one running scalar).
    loss_sum = jnp.sum(loss_parts)
    norm = jnp.maximum(jnp.sum(norm_parts), jnp.float32(1.0))
    return loss_sum / norm


if __name__ == "__main__":
    key = jax.random.PRNGKey(0)
    k1, k2, k3, k4 = jax.random.split(key, 4)

    N, C, H, W = 2, 4, 16, 16
    output = jax.random.uniform(k1, (N, C, H, W), dtype=jnp.float32,
                                minval=0.01, maxval=0.99)
    target = (jax.random.uniform(k2, (N, C, H, W)) > 0.5).astype(jnp.float32)
    mask = (jax.random.uniform(k3, (N, C, H, W)) > 0.3).astype(jnp.float32)
    valid_channel_idx = jax.random.uniform(k4, (N, C)) > 0.25  # bool (N, C)

    result = focal_loss(output, target, mask, valid_channel_idx)
    jax.block_until_ready(result)

    # Pure-JAX reference (same math as the PyTorch forward, un-simplified form).
    pt = output * target + (1.0 - output) * (1.0 - target)
    pt = jnp.clip(pt, EPS, 1.0 - EPS)
    at = ALPHA * target + (1.0 - ALPHA) * (1.0 - target)
    loss_ref = -at * (1.0 - pt) ** 2 * jnp.log(pt)
    vmask = valid_channel_idx.astype(jnp.float32)[:, :, None, None]
    norm_ref = jnp.maximum(jnp.sum(target * mask), 1.0)
    ref = jnp.sum(loss_ref * vmask) / norm_ref

    assert jnp.allclose(result, ref, rtol=1e-5, atol=1e-5), (result, ref)
    print("KERNEL_OK")
</pallas_src>

<mosaic_0001>
module attributes {stable_mosaic.version = 11 : i64} {
  func.func @_focal_loss_kernel(%arg0: i32, %arg1: i32, %arg2: memref<8x128xf32, #tpu.memory_space<vmem>>, %arg3: memref<8x128xf32, #tpu.memory_space<vmem>>, %arg4: memref<8x128xf32, #tpu.memory_space<vmem>>, %arg5: memref<8x1xf32, #tpu.memory_space<vmem>>, %arg6: memref<8x128xf32, #tpu.memory_space<vmem>>, %arg7: memref<8x128xf32, #tpu.memory_space<vmem>>) attributes {dimension_semantics = [#tpu.dimension_semantics<parallel>, #tpu.dimension_semantics<parallel>], iteration_bounds = array<i64: 1, 2>, scalar_prefetch = 0 : i64, scratch_operands = 0 : i64, tpu.core_type = #tpu.core_type<tc>, window_params = [{transform_indices = @transform_0, window_bounds = array<i64: 8, 128>}, {transform_indices = @transform_1, window_bounds = array<i64: 8, 128>}, {transform_indices = @transform_2, window_bounds = array<i64: 8, 128>}, {transform_indices = @transform_3, window_bounds = array<i64: 8, 1>}, {transform_indices = @transform_4, window_bounds = array<i64: 8, 128>}, {transform_indices = @transform_5, window_bounds = array<i64: 8, 128>}]} {
    %c0 = arith.constant 0 : index
    %c0_0 = arith.constant 0 : index
    %0 = vector.load %arg2[%c0, %c0_0] : memref<8x128xf32, #tpu.memory_space<vmem>>, vector<8x128xf32>
    %c0_1 = arith.constant 0 : index
    %c0_2 = arith.constant 0 : index
    %1 = vector.load %arg3[%c0_1, %c0_2] : memref<8x128xf32, #tpu.memory_space<vmem>>, vector<8x128xf32>
    %c0_3 = arith.constant 0 : index
    %c0_4 = arith.constant 0 : index
    %2 = vector.load %arg4[%c0_3, %c0_4] : memref<8x128xf32, #tpu.memory_space<vmem>>, vector<8x128xf32>
    %c0_5 = arith.constant 0 : index
    %c0_6 = arith.constant 0 : index
    %3 = vector.load %arg5[%c0_5, %c0_6] : memref<8x1xf32, #tpu.memory_space<vmem>>, vector<8x1xf32>
    %cst = arith.constant 1.000000e+00 : f32
    %4 = vector.broadcast %cst : f32 to vector<8x128xf32>
    %5 = arith.subf %4, %0 : vector<8x128xf32>
    %6 = arith.subf %5, %1 : vector<8x128xf32>
    %7 = arith.mulf %0, %1 : vector<8x128xf32>
    %cst_7 = arith.constant 2.000000e+00 : f32
    %8 = vector.broadcast %cst_7 : f32 to vector<8x128xf32>
    %9 = arith.mulf %8, %7 : vector<8x128xf32>
    %10 = arith.addf %6, %9 : vector<8x128xf32>
    %cst_8 = arith.constant 9.99999997E-7 : f32
    %cst_9 = arith.constant 0.999998986 : f32
    %11 = vector.broadcast %cst_8 : f32 to vector<8x128xf32>
    %12 = arith.maximumf %11, %10 : vector<8x128xf32>
    %13 = vector.broadcast %cst_9 : f32 to vector<8x128xf32>
    %14 = arith.minimumf %13, %12 : vector<8x128xf32>
    %cst_10 = arith.constant -5.000000e-01 : f32
    %15 = vector.broadcast %cst_10 : f32 to vector<8x128xf32>
    %16 = arith.mulf %15, %1 : vector<8x128xf32>
    %cst_11 = arith.constant 7.500000e-01 : f32
    %17 = vector.broadcast %cst_11 : f32 to vector<8x128xf32>
    %18 = arith.addf %17, %16 : vector<8x128xf32>
    %cst_12 = arith.constant 1.000000e+00 : f32
    %19 = vector.broadcast %cst_12 : f32 to vector<8x128xf32>
    %20 = arith.subf %19, %14 : vector<8x128xf32>
    %21 = arith.mulf %20, %20 : vector<8x128xf32>
    %cst_13 = arith.constant 0.000000e+00 : f32
    %22 = vector.broadcast %cst_13 : f32 to vector<8x128xf32>
    %23 = arith.subf %22, %18 : vector<8x128xf32>
    %24 = arith.mulf %23, %21 : vector<8x128xf32>
    %25 = math.log %14 : vector<8x128xf32>
    %26 = arith.mulf %24, %25 : vector<8x128xf32>
    %27 = vector.broadcast %3 : vector<8x1xf32> to vector<8x128xf32>
    %28 = arith.mulf %26, %27 : vector<8x128xf32>
    %29 = arith.mulf %1, %2 : vector<8x128xf32>
    %30 = tpu.iota {dimensions = array<i32: 0>} : vector<8x128xi32>
    %31 = tpu.iota {dimensions = array<i32: 1>} : vector<8x128xi32>
    %c0_i32 = arith.constant 0 : i32
    %32 = vector.broadcast %c0_i32 : i32 to vector<8x128xi32>
    %33 = arith.cmpi eq, %30, %32 : vector<8x128xi32>
    %c0_i32_14 = arith.constant 0 : i32
    %34 = vector.broadcast %c0_i32_14 : i32 to vector<8x128xi32>
    %35 = arith.cmpi eq, %31, %34 : vector<8x128xi32>
    %36 = arith.andi %33, %35 : vector<8x128xi1>
    %cst_15 = arith.constant dense<0.000000e+00> : vector<128xf32>
    %37 = vector.multi_reduction <add>, %28, %cst_15 [0] : vector<8x128xf32> to vector<128xf32>
    %38 = vector.shape_cast %37 : vector<128xf32> to vector<1x128xf32>
    %cst_16 = arith.constant dense<0.000000e+00> : vector<1xf32>
    %39 = vector.multi_reduction <add>, %38, %cst_16 [1] : vector<1x128xf32> to vector<1xf32>
    %40 = vector.shape_cast %39 : vector<1xf32> to vector<1x1xf32>
    %cst_17 = arith.constant 0.000000e+00 : f32
    %41 = vector.shape_cast %40 : vector<1x1xf32> to vector<1x1xf32>
    %42 = vector.broadcast %41 : vector<1x1xf32> to vector<8x128xf32>
    %43 = vector.broadcast %cst_17 : f32 to vector<8x128xf32>
    %44 = arith.select %36, %42, %43 : vector<8x128xi1>, vector<8x128xf32>
    %c0_18 = arith.constant 0 : index
    %c0_19 = arith.constant 0 : index
    %45 = vector.load %arg6[%c0_18, %c0_19] : memref<8x128xf32, #tpu.memory_space<vmem>>, vector<8x128xf32>
    tpu.vector_store %arg6[%c0_18, %c0_19], %44 {strides = array<i32>} : memref<8x128xf32, #tpu.memory_space<vmem>>, vector<8x128xf32>,
    %cst_20 = arith.constant dense<0.000000e+00> : vector<128xf32>
    %46 = vector.multi_reduction <add>, %29, %cst_20 [0] : vector<8x128xf32> to vector<128xf32>
    %47 = vector.shape_cast %46 : vector<128xf32> to vector<1x128xf32>
    %cst_21 = arith.constant dense<0.000000e+00> : vector<1xf32>
    %48 = vector.multi_reduction <add>, %47, %cst_21 [1] : vector<1x128xf32> to vector<1xf32>
    %49 = vector.shape_cast %48 : vector<1xf32> to vector<1x1xf32>
    %cst_22 = arith.constant 0.000000e+00 : f32
    %50 = vector.shape_cast %49 : vector<1x1xf32> to vector<1x1xf32>
    %51 = vector.broadcast %50 : vector<1x1xf32> to vector<8x128xf32>
    %52 = vector.broadcast %cst_22 : f32 to vector<8x128xf32>
    %53 = arith.select %36, %51, %52 : vector<8x128xi1>, vector<8x128xf32>
    %c0_23 = arith.constant 0 : index
    %c0_24 = arith.constant 0 : index
    %54 = vector.load %arg7[%c0_23, %c0_24] : memref<8x128xf32, #tpu.memory_space<vmem>>, vector<8x128xf32>
    tpu.vector_store %arg7[%c0_23, %c0_24], %53 {strides = array<i32>} : memref<8x128xf32, #tpu.memory_space<vmem>>, vector<8x128xf32>,
    return
  }
  func.func @transform_0(%arg0: i32, %arg1: i32) -> (i32, i32) {
    %c0_i32 = arith.constant 0 : i32
    return %arg0, %arg1 : i32, i32
  }
  func.func @transform_1(%arg0: i32, %arg1: i32) -> (i32, i32) {
    %c0_i32 = arith.constant 0 : i32
    return %arg0, %arg1 : i32, i32
  }
  func.func @transform_2(%arg0: i32, %arg1: i32) -> (i32, i32) {
    %c0_i32 = arith.constant 0 : i32
    return %arg0, %arg1 : i32, i32
  }
  func.func @transform_3(%arg0: i32, %arg1: i32) -> (i32, i32) {
    %c0_i32 = arith.constant 0 : i32
    %c0_i32_0 = arith.constant 0 : i32
    return %arg0, %c0_i32 : i32, i32
  }
  func.func @transform_4(%arg0: i32, %arg1: i32) -> (i32, i32) {
    %c0_i32 = arith.constant 0 : i32
    return %arg0, %arg1 : i32, i32
  }
  func.func @transform_5(%arg0: i32, %arg1: i32) -> (i32, i32) {
    %c0_i32 = arith.constant 0 : i32
    return %arg0, %arg1 : i32, i32
  }
}

</mosaic_0001>

<llo_original>
// kernel: tpu_custom_call.1
$region0: #{tpu_custom_call.1}
  #allocation0 [shape = 'u32[]', space=smem, size = 0x4, offset = 0x4, fixed_abs, tag = 'smem constant byte address 0x4 - core index']
  #allocation1 [shape = 'u32[144,128]{1,0:T(1,128)}', space=vmem, size = 0x12000, scoped, tag = 'internal scratch']
  %s0 = inlined_call_operand.hbm [shape: f32[8,256], index: 0, kind: input, shape index: {}]
  %s1 = inlined_call_operand.hbm [shape: f32[8,256], index: 1, kind: input, shape index: {}]
  %s2 = inlined_call_operand.vmem [shape: f32[8,256], index: 2, kind: input, shape index: {}]
  %s3 = inlined_call_operand.vmem [shape: f32[8,1], index: 3, kind: input, shape index: {}]
  %s4 = inlined_call_operand.hbm [shape: f32[8,256], index: 4, kind: output, shape index: {0}]
  %s5 = inlined_call_operand.hbm [shape: f32[8,256], index: 5, kind: output, shape index: {1}]
  %6 = xla_tuple %s4, %s5
  %s7 = sld [smem:[#allocation0]]
  $region65: #{tpu_custom_call.1} parent=0
    _
  %s9 = ssub.s32 1, %s7
  %s10 = scalar_select 0, %s9, %s7
  $region1: #{tpu_custom_call.1} parent=0
    #allocation2 [shape = 'u8[8192]{0}', space=vmem, size = 0x2000, scoped, tag = 'input window, operand 0']
    #allocation3 [shape = 's32[2]{0}', space=sflag, size = 0x8, scoped, tag = 'scoped memory for tpu_custom_call.1']
    #allocation4 [shape = 's32[2]{0}', space=sflag, size = 0x8, scoped, tag = 'scoped memory for tpu_custom_call.1']
    #allocation5 [shape = 'u8[8192]{0}', space=vmem, size = 0x2000, scoped, tag = 'input window, operand 1']
    #allocation6 [shape = 's32[2]{0}', space=sflag, size = 0x8, scoped, tag = 'scoped memory for tpu_custom_call.1']
    #allocation7 [shape = 'u8[8192]{0}', space=vmem, size = 0x2000, scoped, tag = 'output window, operand 0']
    #allocation8 [shape = 'u8[8192]{0}', space=vmem, size = 0x2000, scoped, tag = 'output window, operand 1']
    #allocation9 [shape = 's32[2]{0}', space=sflag, size = 0x8, scoped, tag = 'scoped memory for tpu_custom_call.1']
    %11 = vsyncpa [#allocation3], 0
    %s12 = scalar_lea.sflag [#allocation3], 1
    %13 = vsyncpa %s12, 0
    %14 = vsyncpa [#allocation6], 0
    %s15 = scalar_lea.sflag [#allocation6], 1
    %16 = vsyncpa %s15, 0
    %17 = vsyncpa [#allocation4], 0
    %s18 = scalar_lea.sflag [#allocation4], 1
    %19 = vsyncpa %s18, 0
    %20 = vsyncpa [#allocation9], 0
    %s21 = scalar_lea.sflag [#allocation9], 1
    %22 = vsyncpa %s21, 0
    loop: start=0, step=1, limit=4
    $region2: #{tpu_custom_call.1} parent=1 // loop_pre_header
      _
    $region3: #{tpu_custom_call.1} parent=1 // loop_header
      %s24 = sphi 0, %s28
      %p25 = scmp.ge.s32.totalorder %s24, 4
      %s31 = sphi 0, %s43
      %s32 = sphi 0, %s39
      %s33 = sphi 0, %s31
      %s34 = sphi 0, %s32
      %s35 = sphi 0, %s33
      %s36 = sphi 0, %s34
      %s48 = sphi 0, %s50
      %s51 = sphi 0, %s48
      %s52 = sphi 0, %s51
      %s68 = sphi 0, %s52
      %s76 = sphi 0, %s78
      %s79 = sphi 0, %s76
      %s80 = sphi 0, %s79
      %s96 = sphi 0, %s80
      %s104 = sphi 0, %s106
      %s107 = sphi 0, %s104
      %s108 = sphi 0, %s107
      %s124 = sphi 0, %s108
      %s130 = sphi 0, %s132
      %s133 = sphi 0, %s130
      %s134 = sphi 0, %s133
      %s150 = sphi 0, %s134
      %s158 = sphi 0, %s160
      %s161 = sphi 0, %s158
      %s162 = sphi 0, %s161
      %s178 = sphi 0, %s162
      %s186 = sphi 0, %s188
      %s189 = sphi 0, %s186
      %s190 = sphi 0, %s189
      %s206 = sphi 0, %s190
    $region4: #{tpu_custom_call.1} parent=1 // loop_header_branch
      %27 = sbr.rel (%p25) target = $region8
    $region5: #{tpu_custom_call.1} parent=1 // loop_body
      %s29 = ssub.s32 %s24, 1
      %s30 = ssub.s32 %s24, 2
      %s37 = sadd.s32 1, %s32
      %p38 = scmp.ge.s32.totalorder %s37, 2
      %s39 = scalar_select %p38, 0, %s37
      %s40 = sadd.s32 1, %s31
      %s41 = scalar_select %p38, %s40, %s31
      %p42 = scmp.ge.s32.totalorder %s41, 1
      %s43 = scalar_select %p42, 0, %s41
      %s44 = ssub.s32 %s31, %s43
      %s45 = ssub.s32 %s32, %s39
      %s46 = sor.u32 %s44, %s45
      %p47 = scmp.eq.s32.totalorder %s46, 0
      %s49 = sadd.s32 %s48, 1
      %s50 = scalar_select %p47, %s48, %s49
      %p53 = pneg %p47
      %p54 = scmp.eq.s32.totalorder %s24, 1
      %p55 = por %p53, %p54
      %p56 = scmp.ne.s32.totalorder %s48, %s51
      %p57 = scmp.eq.s32.totalorder %s24, 0
      %p58 = por %p56, %p57
      %p59 = scmp.ne.s32.totalorder %s48, %s51
      %p60 = scmp.eq.s32.totalorder %s29, 1
      %p61 = por %p59, %p60
      %p62 = scmp.ne.s32.totalorder %s51, %s52
      %p63 = scmp.eq.s32.totalorder %s29, 0
      %p64 = por %p62, %p63
      %p65 = scmp.ne.s32.totalorder %s51, %s52
      %p66 = scmp.eq.s32.totalorder %s30, 1
      %p67 = por %p65, %p66
      %p69 = scmp.ne.s32.totalorder %s52, %s68
      %p70 = scmp.eq.s32.totalorder %s30, 0
      %p71 = por %p69, %p70
      %s72 = ssub.s32 %s31, %s43
      %s73 = ssub.s32 %s32, %s39
      %s74 = sor.u32 %s72, %s73
      %p75 = scmp.eq.s32.totalorder %s74, 0
      %s77 = sadd.s32 %s76, 1
      %s78 = scalar_select %p75, %s76, %s77
      %p81 = pneg %p75
      %p82 = scmp.eq.s32.totalorder %s24, 1
      %p83 = por %p81, %p82
      %p84 = scmp.ne.s32.totalorder %s76, %s79
      %p85 = scmp.eq.s32.totalorder %s24, 0
      %p86 = por %p84, %p85
      %p87 = scmp.ne.s32.totalorder %s76, %s79
      %p88 = scmp.eq.s32.totalorder %s29, 1
      %p89 = por %p87, %p88
      %p90 = scmp.ne.s32.totalorder %s79, %s80
      %p91 = scmp.eq.s32.totalorder %s29, 0
      %p92 = por %p90, %p91
      %p93 = scmp.ne.s32.totalorder %s79, %s80
      %p94 = scmp.eq.s32.totalorder %s30, 1
      %p95 = por %p93, %p94
      %p97 = scmp.ne.s32.totalorder %s80, %s96
      %p98 = scmp.eq.s32.totalorder %s30, 0
      %p99 = por %p97, %p98
      %s100 = ssub.s32 %s31, %s43
      %s101 = ssub.s32 %s32, %s39
      %s102 = sor.u32 %s100, %s101
      %p103 = scmp.eq.s32.totalorder %s102, 0
      %s105 = sadd.s32 %s104, 1
      %s106 = scalar_select %p103, %s104, %s105
      %p109 = pneg %p103
      %p110 = scmp.eq.s32.totalorder %s24, 1
      %p111 = por %p109, %p110
      %p112 = scmp.ne.s32.totalorder %s104, %s107
      %p113 = scmp.eq.s32.totalorder %s24, 0
      %p114 = por %p112, %p113
      %p115 = scmp.ne.s32.totalorder %s104, %s107
      %p116 = scmp.eq.s32.totalorder %s29, 1
      %p117 = por %p115, %p116
      %p118 = scmp.ne.s32.totalorder %s107, %s108
      %p119 = scmp.eq.s32.totalorder %s29, 0
      %p120 = por %p118, %p119
      %p121 = scmp.ne.s32.totalorder %s107, %s108
      %p122 = scmp.eq.s32.totalorder %s30, 1
      %p123 = por %p121, %p122
      %p125 = scmp.ne.s32.totalorder %s108, %s124
      %p126 = scmp.eq.s32.totalorder %s30, 0
      %p127 = por %p125, %p126
      %s128 = ssub.s32 %s31, %s43
      %p129 = scmp.eq.s32.totalorder %s128, 0
      %s131 = sadd.s32 %s130, 1
      %s132 = scalar_select %p129, %s130, %s131
      %p135 = pneg %p129
      %p136 = scmp.eq.s32.totalorder %s24, 1
      %p137 = por %p135, %p136
      %p138 = scmp.ne.s32.totalorder %s130, %s133
      %p139 = scmp.eq.s32.totalorder %s24, 0
      %p140 = por %p138, %p139
      %p141 = scmp.ne.s32.totalorder %s130, %s133
      %p142 = scmp.eq.s32.totalorder %s29, 1
      %p143 = por %p141, %p142
      %p144 = scmp.ne.s32.totalorder %s133, %s134
      %p145 = scmp.eq.s32.totalorder %s29, 0
      %p146 = por %p144, %p145
      %p147 = scmp.ne.s32.totalorder %s133, %s134
      %p148 = scmp.eq.s32.totalorder %s30, 1
      %p149 = por %p147, %p148
      %p151 = scmp.ne.s32.totalorder %s134, %s150
      %p152 = scmp.eq.s32.totalorder %s30, 0
      %p153 = por %p151, %p152
      %s154 = ssub.s32 %s31, %s43
      %s155 = ssub.s32 %s32, %s39
      %s156 = sor.u32 %s154, %s155
      %p157 = scmp.eq.s32.totalorder %s156, 0
      %s159 = sadd.s32 %s158, 1
      %s160 = scalar_select %p157, %s158, %s159
      %p163 = pneg %p157
      %p164 = scmp.eq.s32.totalorder %s24, 1
      %p165 = por %p163, %p164
      %p166 = scmp.ne.s32.totalorder %s158, %s161
      %p167 = scmp.eq.s32.totalorder %s24, 0
      %p168 = por %p166, %p167
      %p169 = scmp.ne.s32.totalorder %s158, %s161
      %p170 = scmp.eq.s32.totalorder %s29, 1
      %p171 = por %p169, %p170
      %p172 = scmp.ne.s32.totalorder %s161, %s162
      %p173 = scmp.eq.s32.totalorder %s29, 0
      %p174 = por %p172, %p173
      %p175 = scmp.ne.s32.totalorder %s161, %s162
      %p176 = scmp.eq.s32.totalorder %s30, 1
      %p177 = por %p175, %p176
      %p179 = scmp.ne.s32.totalorder %s162, %s178
      %p180 = scmp.eq.s32.totalorder %s30, 0
      %p181 = por %p179, %p180
      %s182 = ssub.s32 %s31, %s43
      %s183 = ssub.s32 %s32, %s39
      %s184 = sor.u32 %s182, %s183
      %p185 = scmp.eq.s32.totalorder %s184, 0
      %s187 = sadd.s32 %s186, 1
      %s188 = scalar_select %p185, %s186, %s187
      %p191 = pneg %p185
      %p192 = scmp.eq.s32.totalorder %s24, 1
      %p193 = por %p191, %p192
      %p194 = scmp.ne.s32.totalorder %s186, %s189
      %p195 = scmp.eq.s32.totalorder %s24, 0
      %p196 = por %p194, %p195
      %p197 = scmp.ne.s32.totalorder %s186, %s189
      %p198 = scmp.eq.s32.totalorder %s29, 1
      %p199 = por %p197, %p198
      %p200 = scmp.ne.s32.totalorder %s189, %s190
      %p201 = scmp.eq.s32.totalorder %s29, 0
      %p202 = por %p200, %p201
      %p203 = scmp.ne.s32.totalorder %s189, %s190
      %p204 = scmp.eq.s32.totalorder %s30, 1
      %p205 = por %p203, %p204
      %p207 = scmp.ne.s32.totalorder %s190, %s206
      %p208 = scmp.eq.s32.totalorder %s30, 0
      %p209 = por %p207, %p208
      %p210 = scmp.le.s32.totalorder 1, %s24
      %p211 = scmp.lt.s32.totalorder %s24, 3
      %p212 = pnand %p210, %p211
      %p213 = pneg %p212
      // Predicated region
      $region9: #{tpu_custom_call.1} parent=5 // pred_check
        _
      $region10: #{tpu_custom_call.1} parent=5 // pred_check_branch
        %215 = sbr.rel (%p212) target = $region12
      $region11: #{tpu_custom_call.1} parent=5 // pred_region
        %s216 = ssub.s32 %s24, 1
        // Predicated region
        $region13: #{tpu_custom_call.1} parent=11 // pred_check
          %p217 = pneg %p146
        $region14: #{tpu_custom_call.1} parent=11 // pred_check_branch
          %219 = sbr.rel (%p217) target = $region16
        $region15: #{tpu_custom_call.1} parent=11 // pred_region
          %p220 = scmp.lt.s32.totalorder %s33, 0
          %s221 = scalar_select %p220, %s33, 0
          %s222 = smul.addr %s221, 8
          %s223 = scalar_lea.vmem %s3, %s222
        $region16: #{tpu_custom_call.1} parent=11 // pred_fallthru
          _
      $region12: #{tpu_custom_call.1} parent=5 // pred_fallthru
        _
      %p224 = scmp.lt.s32.totalorder %s24, 2
      // Predicated region
      $region17: #{tpu_custom_call.1} parent=5 // pred_check
        %p225 = pneg %p224
      $region18: #{tpu_custom_call.1} parent=5 // pred_check_branch
        %227 = sbr.rel (%p225) target = $region20
      $region19: #{tpu_custom_call.1} parent=5 // pred_region
        // Predicated region
        $region21: #{tpu_custom_call.1} parent=19 // pred_check
          %p228 = pneg %p58
        $region22: #{tpu_custom_call.1} parent=19 // pred_check_branch
          %230 = sbr.rel (%p228) target = $region24
        $region23: #{tpu_custom_call.1} parent=19 // pred_region
          %s231 = sand.u32 %s48, 1
          %s232 = scalar_lea.sflag [#allocation3], %s231
          %s233 = sand.u32 %s48, 1
          %s234 = smul.addr %s233, 8
          %s235 = scalar_lea.vmem [#allocation2], %s234
          %s237 = ssub.s32 128, 128
          %238 = vsyncadd %s232, %s237
          %s239 = smul.addr %s31, 2
          %s240 = sadd.s32 %s32, %s239
          %s241 = smul.addr %s240, 128
          %s242 = scalar_lea.hbm %s0, %s241
          %s244 = sshll.u32 %s235, 4
          %s245 = int_to_ptr.vmem [resolvable:$true] %s244
          %247 = dma.hbm_to_vmem [thread:$0]  %s242, 128, %s245, %s232
        $region24: #{tpu_custom_call.1} parent=19 // pred_fallthru
          _
        // Predicated region
        $region25: #{tpu_custom_call.1} parent=19 // pred_check
          %p248 = pneg %p86
        $region26: #{tpu_custom_call.1} parent=19 // pred_check_branch
          %250 = sbr.rel (%p248) target = $region28
        $region27: #{tpu_custom_call.1} parent=19 // pred_region
          %s251 = sand.u32 %s76, 1
          %s252 = scalar_lea.sflag [#allocation6], %s251
          %s253 = sand.u32 %s76, 1
          %s254 = smul.addr %s253, 8
          %s255 = scalar_lea.vmem [#allocation5], %s254
          %s257 = ssub.s32 128, 128
          %258 = vsyncadd %s252, %s257
          %s259 = smul.addr %s31, 2
          %s260 = sadd.s32 %s32, %s259
          %s261 = smul.addr %s260, 128
          %s262 = scalar_lea.hbm %s1, %s261
          %s264 = sshll.u32 %s255, 4
          %s265 = int_to_ptr.vmem [resolvable:$true] %s264
          %267 = dma.hbm_to_vmem [thread:$0]  %s262, 128, %s265, %s252
        $region28: #{tpu_custom_call.1} parent=19 // pred_fallthru
          _
        // Predicated region
        $region29: #{tpu_custom_call.1} parent=19 // pred_check
          %p268 = pneg %p114
        $region30: #{tpu_custom_call.1} parent=19 // pred_check_branch
          %270 = sbr.rel (%p268) target = $region32
        $region31: #{tpu_custom_call.1} parent=19 // pred_region
          %p271 = scmp.lt.s32.totalorder %s31, 0
          %s272 = scalar_select %p271, %s31, 0
          %p273 = scmp.lt.s32.totalorder %s32, 1
          %s274 = scalar_select %p273, %s32, 1
          %s275 = smul.addr %s272, 2
          %s276 = sadd.s32 %s274, %s275
          %s277 = smul.addr %s276, 8
          %s278 = scalar_lea.vmem %s2, %s277
        $region32: #{tpu_custom_call.1} parent=19 // pred_fallthru
          _
      $region20: #{tpu_custom_call.1} parent=5 // pred_fallthru
        _
      %p279 = scmp.le.s32.totalorder 1, %s24
      %p280 = scmp.lt.s32.totalorder %s24, 3
      %p281 = pnand %p279, %p280
      %p282 = pneg %p281
      // Predicated region
      $region33: #{tpu_custom_call.1} parent=5 // pred_check
        _
      $region34: #{tpu_custom_call.1} parent=5 // pred_check_branch
        %284 = sbr.rel (%p281) target = $region36
      $region35: #{tpu_custom_call.1} parent=5 // pred_region
        %s285 = ssub.s32 %s24, 1
        %s286 = sand.u32 %s51, 1
        %s287 = scalar_lea.sflag [#allocation3], %s286
        %s288 = sand.u32 %s51, 1
        %s289 = smul.addr %s288, 8
        %s290 = scalar_lea.vmem [#allocation2], %s289
        // Predicated region
        $region37: #{tpu_custom_call.1} parent=35 // pred_check
          %p291 = pneg %p64
        $region38: #{tpu_custom_call.1} parent=35 // pred_check_branch
          %293 = sbr.rel (%p291) target = $region40
        $region39: #{tpu_custom_call.1} parent=35 // pred_region
          %294 = dma.done %s287, 128
        $region40: #{tpu_custom_call.1} parent=35 // pred_fallthru
          _
        %s295 = sand.u32 %s79, 1
        %s296 = scalar_lea.sflag [#allocation6], %s295
        %s297 = sand.u32 %s79, 1
        %s298 = smul.addr %s297, 8
        %s299 = scalar_lea.vmem [#allocation5], %s298
        // Predicated region
        $region41: #{tpu_custom_call.1} parent=35 // pred_check
          %p300 = pneg %p92
        $region42: #{tpu_custom_call.1} parent=35 // pred_check_branch
          %302 = sbr.rel (%p300) target = $region44
        $region43: #{tpu_custom_call.1} parent=35 // pred_region
          %303 = dma.done %s296, 128
        $region44: #{tpu_custom_call.1} parent=35 // pred_fallthru
          _
        %s304 = sand.u32 %s51, 1
        %s305 = scalar_lea.sflag [#allocation3], %s304
        %s306 = sand.u32 %s51, 1
        %s307 = smul.addr %s306, 8
        %s308 = scalar_lea.vmem [#allocation2], %s307
        %p309 = pneg %p64
        %p310 = pneg %p61
        %s311 = sand.u32 %s79, 1
        %s312 = scalar_lea.sflag [#allocation6], %s311
        %s313 = sand.u32 %s79, 1
        %s314 = smul.addr %s313, 8
        %s315 = scalar_lea.vmem [#allocation5], %s314
        %p316 = pneg %p92
        %p317 = pneg %p89
        %p318 = scmp.lt.s32.totalorder %s33, 0
        %s319 = scalar_select %p318, %s33, 0
        %p320 = scmp.lt.s32.totalorder %s34, 1
        %s321 = scalar_select %p320, %s34, 1
        %s322 = smul.addr %s319, 2
        %s323 = sadd.s32 %s321, %s322
        %s324 = smul.addr %s323, 8
        %s325 = scalar_lea.vmem %s2, %s324
        %p326 = pneg %p120
        %p327 = pneg %p117
        %p328 = scmp.lt.s32.totalorder %s33, 0
        %s329 = scalar_select %p328, %s33, 0
        %s330 = smul.addr %s329, 8
        %s331 = scalar_lea.vmem %s3, %s330
        %p332 = pneg %p146
        %p333 = pneg %p143
        %p334 = pneg %p174
        %p335 = pneg %p171
        %s336 = sand.u32 %s161, 1
        %s337 = scalar_lea.sflag [#allocation4], %s336
        %s338 = sand.u32 %s161, 1
        %s339 = smul.addr %s338, 8
        %s340 = scalar_lea.vmem [#allocation7], %s339
        %p341 = pneg %p202
        %p342 = pneg %p199
        %s343 = sand.u32 %s189, 1
        %s344 = scalar_lea.sflag [#allocation9], %s343
        %s345 = sand.u32 %s189, 1
        %s346 = smul.addr %s345, 8
        %s347 = scalar_lea.vmem [#allocation8], %s346
        %p348 = scmp.lt.s32.totalorder %s33, 0
        %s349 = scalar_select %p348, %s33, 0
        %p350 = scmp.lt.s32.totalorder %s34, 1
        %s351 = scalar_select %p350, %s34, 1
        %s352 = smul.addr %s349, 2
        %s353 = sadd.s32 %s351, %s352
        %s354 = smul.addr %s353, 8
        %s355 = scalar_lea.vmem %s2, %s354
        %p356 = scmp.lt.s32.totalorder %s33, 0
        %s357 = scalar_select %p356, %s33, 0
        %s358 = smul.addr %s357, 8
        %s359 = scalar_lea.vmem %s3, %s358
        %v360 = vld [vmem:[%s290] sm:$0xff]
        %v361 = vld [vmem:[%s299] sm:$0xff]
        %v362 = vld [vmem:[%s355] sm:$0xff]
        %v363 = vld [vmem:[%s359] sm:$0xff]
        %v364 = vsub.f32 1.0, %v360
        %v365 = vsub.f32 %v364, %v361
        %v366 = vmul.f32 %v360, %v361
        %v367 = vmul.f32 %v366, 2.0
        %v368 = vadd.f32 %v365, %v367
        %v369 = vmax.f32 %v368, 1e-06
        %v370 = vmin.f32 %v369, 0.999999
        %v371 = vmul.f32 %v361, -0.5
        %v372 = vadd.f32 %v371, 0.75
        %v373 = vsub.f32 1.0, %v370
        %v374 = vmul.f32 %v373, %v373
        %v375 = vsub.f32 0.0, %v372
        %v376 = vmul.f32 %v375, %v374
        %v377 = vlog2.pop %v370
        %v378 = vmul.f32 %v377, 0.6931472
        %v379 = vmul.f32 %v376, %v378
        %381 = vset.pattern.permute.xlu0 0
        %382 = vperm.xlu0 %381, %v363
        %v383 = vpop.permute.xlu0 %382
        %v385 = vmul.f32 %v379, %v383
        %v386 = vmul.f32 %v361, %v362
        %v387 = vlaneseq
        %v388 = vshrl.u32 %v387, 7
        %v389 = vlaneseq
        %v390 = vand.u32 %v389, 127
        %vm391 = vcmp.eq.s32.totalorder %v388, 0
        %vm392 = vcmp.eq.s32.totalorder %v390, 0
        %vm393 = vmand %vm391, %vm392
        %v394 = vrot.slane %v385, 4
        %v395 = vadd.f32 %v385, %v394
        %v396 = vrot.slane %v395, 2
        %v397 = vadd.f32 %v395, %v396
        %v398 = vrot.slane %v397, 1
        %v399 = vadd.f32 %v397, %v398
        %400 = vadd.xlane.f32.xlu0 %v399
        %v401 = vpop.xlane.xlu0 %400
        %v402 = vsel %vm393, %v401, 0.0
        %403 = vst [vmem:[%s340] sm:$0xff] %v402
        %v404 = vrot.slane %v386, 4
        %v405 = vadd.f32 %v386, %v404
        %v406 = vrot.slane %v405, 2
        %v407 = vadd.f32 %v405, %v406
        %v408 = vrot.slane %v407, 1
        %v409 = vadd.f32 %v407, %v408
        %410 = vadd.xlane.f32.xlu0 %v409
        %v411 = vpop.xlane.xlu0 %410
        %v412 = vsel %vm393, %v411, 0.0
        %413 = vst [vmem:[%s347] sm:$0xff] %v412
        %s414 = sand.u32 %s161, 1
        %s415 = scalar_lea.sflag [#allocation4], %s414
        %s416 = sand.u32 %s161, 1
        %s417 = smul.addr %s416, 8
        %s418 = scalar_lea.vmem [#allocation7], %s417
        %s419 = sand.u32 %s189, 1
        %s420 = scalar_lea.sflag [#allocation9], %s419
        %s421 = sand.u32 %s189, 1
        %s422 = smul.addr %s421, 8
        %s423 = scalar_lea.vmem [#allocation8], %s422
        // Predicated region
        $region45: #{tpu_custom_call.1} parent=35 // pred_check
          %p424 = pneg %p171
        $region46: #{tpu_custom_call.1} parent=35 // pred_check_branch
          %426 = sbr.rel (%p424) target = $region48
        $region47: #{tpu_custom_call.1} parent=35 // pred_region
          %s428 = ssub.s32 128, 128
          %429 = vsyncadd %s415, %s428
          %s430 = smul.addr %s33, 2
          %s431 = sadd.s32 %s34, %s430
          %s432 = smul.addr %s431, 128
          %s433 = scalar_lea.hbm %s4, %s432
          %s435 = sshll.u32 %s418, 4
          %s436 = int_to_ptr.vmem [resolvable:$true] %s435
          %438 = dma.vmem_to_hbm [thread:$0]  %s436, 128, %s433, %s415
        $region48: #{tpu_custom_call.1} parent=35 // pred_fallthru
          _
        // Predicated region
        $region49: #{tpu_custom_call.1} parent=35 // pred_check
          %p439 = pneg %p199
        $region50: #{tpu_custom_call.1} parent=35 // pred_check_branch
          %441 = sbr.rel (%p439) target = $region52
        $region51: #{tpu_custom_call.1} parent=35 // pred_region
          %s443 = ssub.s32 128, 128
          %444 = vsyncadd %s420, %s443
          %s445 = smul.addr %s33, 2
          %s446 = sadd.s32 %s34, %s445
          %s447 = smul.addr %s446, 128
          %s448 = scalar_lea.hbm %s5, %s447
          %s450 = sshll.u32 %s423, 4
          %s451 = int_to_ptr.vmem [resolvable:$true] %s450
          %453 = dma.vmem_to_hbm [thread:$0]  %s451, 128, %s448, %s420
        $region52: #{tpu_custom_call.1} parent=35 // pred_fallthru
          _
      $region36: #{tpu_custom_call.1} parent=5 // pred_fallthru
        _
      %p454 = scmp.le.s32.totalorder 2, %s24
      // Predicated region
      $region53: #{tpu_custom_call.1} parent=5 // pred_check
        %p455 = pneg %p454
      $region54: #{tpu_custom_call.1} parent=5 // pred_check_branch
        %457 = sbr.rel (%p455) target = $region56
      $region55: #{tpu_custom_call.1} parent=5 // pred_region
        %s458 = ssub.s32 %s24, 2
        // Predicated region
        $region57: #{tpu_custom_call.1} parent=55 // pred_check
          %p459 = pneg %p177
        $region58: #{tpu_custom_call.1} parent=55 // pred_check_branch
          %461 = sbr.rel (%p459) target = $region60
        $region59: #{tpu_custom_call.1} parent=55 // pred_region
          %s462 = sand.u32 %s162, 1
          %s463 = scalar_lea.sflag [#allocation4], %s462
          %s464 = sand.u32 %s162, 1
          %s465 = smul.addr %s464, 8
          %s466 = scalar_lea.vmem [#allocation7], %s465
          %467 = dma.done %s463, 128
        $region60: #{tpu_custom_call.1} parent=55 // pred_fallthru
          _
        // Predicated region
        $region61: #{tpu_custom_call.1} parent=55 // pred_check
          %p468 = pneg %p205
        $region62: #{tpu_custom_call.1} parent=55 // pred_check_branch
          %470 = sbr.rel (%p468) target = $region64
        $region63: #{tpu_custom_call.1} parent=55 // pred_region
          %s471 = sand.u32 %s190, 1
          %s472 = scalar_lea.sflag [#allocation9], %s471
          %s473 = sand.u32 %s190, 1
          %s474 = smul.addr %s473, 8
          %s475 = scalar_lea.vmem [#allocation8], %s474
          %476 = dma.done %s472, 128
        $region64: #{tpu_custom_call.1} parent=55 // pred_fallthru
          _
      $region56: #{tpu_custom_call.1} parent=5 // pred_fallthru
        _
    $region6: #{tpu_custom_call.1} parent=1 // loop_footer
      %s28 = sadd.s32 1, %s24
    $region7: #{tpu_custom_call.1} parent=1 // loop_footer_branch
      %23 = sbr.rel target = $region3
    $region8: #{tpu_custom_call.1} parent=1 // loop_exit
      _
    %477 = vsyncpa [#allocation3], 1
    %s478 = scalar_lea.sflag [#allocation3], 1
    %479 = vsyncpa %s478, 1
    %480 = vsyncpa [#allocation6], 1
    %s481 = scalar_lea.sflag [#allocation6], 1
    %482 = vsyncpa %s481, 1
    %483 = vsyncpa [#allocation4], 1
    %s484 = scalar_lea.sflag [#allocation4], 1
    %485 = vsyncpa %s484, 1
    %486 = vsyncpa [#allocation9], 1
    %s487 = scalar_lea.sflag [#allocation9], 1
    %488 = vsyncpa %s487, 1

</llo_original>
